<compile_context>
chip_gen: v7x
topology: tpu7x:2x2x1
jax: 0.10.0
libtpu: 0.0.40
codegen_flags: <defaults>
</compile_context>

<pallas_src>
import functools

import jax
import jax.numpy as jnp
from jax.experimental import pallas as pl
from jax.experimental.pallas import tpu as pltpu


def _mlp_kernel(x_ref, w1_ref, b1_ref, w2_ref, b2_ref, o_ref):
    # layer 1 (row-packed): (rows, p*in) @ (p*in, p*hidden), f32 accumulate
    h = jnp.dot(x_ref[...], w1_ref[...], preferred_element_type=jnp.float32)
    # bias + ReLU in f32 on the VPU
    h = jnp.maximum(h + b1_ref[...], 0.0)
    # layer 2 (row-packed). The cast is a no-op for f32 params; it is a
    # deliberate downcast only when a bf16 compute dtype was requested.
    y = jnp.dot(h.astype(w2_ref.dtype), w2_ref[...],
                preferred_element_type=jnp.float32)
    o_ref[...] = (y + b2_ref[...]).astype(o_ref.dtype)


def _round_down(x, m):
    return (x // m) * m


def _round_up(x, m):
    return ((x + m - 1) // m) * m


@functools.partial(jax.jit, static_argnames=("block_b", "compute_dtype"))
def digit_nn_forward(x, w1, b1, w2, b2, *, block_b=None, compute_dtype=None):
    """Forward pass of DigitNN: relu(x @ w1 + b1) @ w2 + b2.

    w1: (input_size, hidden), b1: (1, hidden) or (hidden,)
    w2: (hidden, out_dim),    b2: (1, out_dim) or (out_dim,)
    compute_dtype: optional low-precision dtype for the (resident) weights and
                   the layer-1 activations; x is never re-cast in the wrapper
                   and accumulation stays f32.
    """
    B, in_dim = x.shape
    hidden = w1.shape[1]
    out_dim = w2.shape[1]
    out_dtype = x.dtype
    if compute_dtype is None:
        compute_dtype = x.dtype
    compute_dtype = jnp.dtype(compute_dtype)
    x_itemsize = jnp.dtype(x.dtype).itemsize
    w_itemsize = compute_dtype.itemsize
    o_itemsize = jnp.dtype(out_dtype).itemsize

    # ---- lane-dense row-packing factor ----------------------------------
    # Pad out_dim up to the next divisor of 128, then pack p = 128/padded_out
    # batch rows per wide row so the output tile is 128 lanes -> unmasked vst.
    if 0 < out_dim <= 128:
        padded_out = out_dim
        while 128 % padded_out != 0:
            padded_out += 1
        p = 128 // padded_out
        # keep the resident block-diagonal W1 small; step p down by 2x
        while p > 1 and (p * in_dim) * (p * hidden) * w_itemsize > 4 * 1024 * 1024:
            p //= 2
    else:
        padded_out = out_dim
        p = 1

    sublane = 16 if x_itemsize == 2 else 8  # 16-bit dtypes pack 2 rows/sublane
    q = sublane * p  # batch rows covered by one packed output tile row-group

    # ---- batch tile size --------------------------------------------------
    if block_b is None:
        # ~2 MiB x tile so the per-step DMA dwarfs the ~0.35us step overhead.
        target_tile_bytes = 2 * 1024 * 1024
        block_b = max(q, _round_down(target_tile_bytes // (in_dim * x_itemsize), q))
        # Keep >= 4 grid steps for large batches (v7x megacore: 2 TCs need
        # >= 2 steps each for any DMA/compute overlap).
        if B >= 4 * q:
            block_b = min(block_b, max(q, _round_down(B // 4, q)))
    else:
        block_b = max(q, _round_down(block_b, q))

    # Pad only to the packing granule (at most q-1 < 128 extra rows), NOT to a
    # block multiple; the partial last grid block is handled by the pipeline.
    b_pad = _round_up(B, q)
    block_b = min(block_b, b_pad)

    # VMEM-footprint guard: keep the per-step working set well under v5e's
    # 16 MiB scoped default (double-buffered x/out + resident weights + f32 h).
    def _footprint(bb):
        r = bb // p
        return (2 * r * p * in_dim * x_itemsize                 # x (2 buffers)
                + 2 * r * p * padded_out * o_itemsize           # out (2 buffers)
                + (p * in_dim) * (p * hidden) * w_itemsize      # W1_bd
                + (p * hidden) * (p * padded_out) * w_itemsize  # W2_bd
                + r * p * hidden * 4                            # f32 h intermediate
                + 2 * p * (hidden + padded_out) * 4)            # biases
    while block_b > q and _footprint(block_b) > 10 * 1024 * 1024:
        block_b = max(q, _round_down(block_b // 2, q))

    if b_pad != B:
        x = jnp.pad(x, ((0, b_pad - B), (0, 0)))

    # ---- wrapper-side repacking (weights are tiny; x/out reshapes are free) --
    xp = x.reshape(b_pad // p, p * in_dim)  # contiguous metadata-only reshape
    eye = jnp.eye(p, dtype=compute_dtype)
    if padded_out != out_dim:
        w2p = jnp.pad(w2, ((0, 0), (0, padded_out - out_dim)))
        b2p = jnp.pad(b2.reshape(1, out_dim), ((0, 0), (0, padded_out - out_dim)))
    else:
        w2p = w2
        b2p = b2.reshape(1, out_dim)
    w1_bd = jnp.kron(eye, w1.astype(compute_dtype))        # (p*in, p*hidden)
    w2_bd = jnp.kron(eye, w2p.astype(compute_dtype))       # (p*hidden, p*padded_out)
    b1_t = jnp.tile(b1.reshape(1, hidden).astype(jnp.float32), (1, p))
    b2_t = jnp.tile(b2p.astype(jnp.float32), (1, p))

    rows = block_b // p               # packed rows per grid step
    R = b_pad // p                    # total packed rows
    grid_b = pl.cdiv(R, rows)

    cost = pl.CostEstimate(
        flops=2 * B * (in_dim * hidden + hidden * out_dim),
        transcendentals=0,
        bytes_accessed=(b_pad * in_dim * x_itemsize
                        + (w1_bd.size + w2_bd.size) * w_itemsize
                        + b_pad * padded_out * o_itemsize),
    )
    vmem_limit = int(min(32 * 1024 * 1024,
                         max(16 * 1024 * 1024, int(_footprint(block_b) * 1.5))))

    out_packed = pl.pallas_call(
        _mlp_kernel,
        out_shape=jax.ShapeDtypeStruct((R, p * padded_out), out_dtype),
        grid_spec=pltpu.PrefetchScalarGridSpec(
            num_scalar_prefetch=0,
            grid=(grid_b,),
            in_specs=[
                pl.BlockSpec((rows, p * in_dim), lambda i: (i, 0)),          # x tile
                pl.BlockSpec((p * in_dim, p * hidden), lambda i: (0, 0)),    # W1 (resident)
                pl.BlockSpec((1, p * hidden), lambda i: (0, 0)),             # b1
                pl.BlockSpec((p * hidden, p * padded_out), lambda i: (0, 0)),# W2 (resident)
                pl.BlockSpec((1, p * padded_out), lambda i: (0, 0)),         # b2
            ],
            out_specs=pl.BlockSpec((rows, p * padded_out), lambda i: (i, 0)),
        ),
        compiler_params=pltpu.CompilerParams(
            dimension_semantics=("parallel",),
            vmem_limit_bytes=vmem_limit),
        cost_estimate=cost,
    )(xp, w1_bd, b1_t, w2_bd, b2_t)

    # Row-major contiguous -> this reshape is a free metadata op.
    out = out_packed.reshape(b_pad, padded_out)
    if b_pad != B or padded_out != out_dim:
        out = out[:B, :out_dim]
    return out


def init_params(key, input_size, num_classes, output_dim, dtype=jnp.float32):
    """Deterministic PyTorch-style uniform(-1/sqrt(fan_in), 1/sqrt(fan_in)) init."""
    k1, k2, k3, k4 = jax.random.split(key, 4)
    lim1 = 1.0 / (input_size ** 0.5)
    lim2 = 1.0 / (num_classes ** 0.5)
    w1 = jax.random.uniform(k1, (input_size, num_classes), dtype, -lim1, lim1)
    b1 = jax.random.uniform(k2, (1, num_classes), dtype, -lim1, lim1)
    w2 = jax.random.uniform(k3, (num_classes, output_dim), dtype, -lim2, lim2)
    b2 = jax.random.uniform(k4, (1, output_dim), dtype, -lim2, lim2)
    return w1, b1, w2, b2


if __name__ == "__main__":
    key = jax.random.PRNGKey(0)

    # --- primary check: small shapes consistent with DigitNN ----------------
    batch, input_size, num_classes, output_dim = 8, 64, 32, 16
    kx, kp, kx2, kp2 = jax.random.split(key, 4)
    x = jax.random.normal(kx, (batch, input_size), jnp.float32)
    w1, b1, w2, b2 = init_params(kp, input_size, num_classes, output_dim)

    out = digit_nn_forward(x, w1, b1, w2, b2)
    out = jax.block_until_ready(out)

    ref = jnp.maximum(x @ w1 + b1, 0.0) @ w2 + b2
    assert out.shape == (batch, output_dim)
    assert jnp.allclose(out, ref, atol=1e-5, rtol=1e-5)

    # --- secondary check: real "digits" case (out_dim=10, ragged batch) -----
    batch2, out_dim2 = 13, 10
    x2 = jax.random.normal(kx2, (batch2, input_size), jnp.float32)
    w1b, b1b, w2b, b2b = init_params(kp2, input_size, num_classes, out_dim2)
    out2 = jax.block_until_ready(digit_nn_forward(x2, w1b, b1b, w2b, b2b))
    ref2 = jnp.maximum(x2 @ w1b + b1b, 0.0) @ w2b + b2b
    assert out2.shape == (batch2, out_dim2)
    assert jnp.allclose(out2, ref2, atol=1e-5, rtol=1e-5)

    print("KERNEL_OK")
</pallas_src>

<mosaic_0001>
module attributes {stable_mosaic.version = 11 : i64} {
  func.func @_mlp_kernel(%arg0: i32, %arg1: memref<8x512xf32, #tpu.memory_space<vmem>>, %arg2: memref<512x256xf32, #tpu.memory_space<vmem>>, %arg3: memref<1x256xf32, #tpu.memory_space<vmem>>, %arg4: memref<256x128xf32, #tpu.memory_space<vmem>>, %arg5: memref<1x128xf32, #tpu.memory_space<vmem>>, %arg6: memref<8x128xf32, #tpu.memory_space<vmem>>) attributes {dimension_semantics = [#tpu.dimension_semantics<parallel>], iteration_bounds = array<i64: 1>, scalar_prefetch = 0 : i64, scratch_operands = 0 : i64, tpu.core_type = #tpu.core_type<tc>, window_params = [{transform_indices = @transform_0, window_bounds = array<i64: 8, 512>}, {pipeline_mode = #tpu.pipeline_mode<synchronous>, transform_indices = @transform_1, window_bounds = array<i64: 512, 256>}, {pipeline_mode = #tpu.pipeline_mode<synchronous>, transform_indices = @transform_2, window_bounds = array<i64: 1, 256>}, {pipeline_mode = #tpu.pipeline_mode<synchronous>, transform_indices = @transform_3, window_bounds = array<i64: 256, 128>}, {pipeline_mode = #tpu.pipeline_mode<synchronous>, transform_indices = @transform_4, window_bounds = array<i64: 1, 128>}, {transform_indices = @transform_5, window_bounds = array<i64: 8, 128>}]} {
    %c0 = arith.constant 0 : index
    %c0_0 = arith.constant 0 : index
    %0 = vector.load %arg1[%c0, %c0_0] : memref<8x512xf32, #tpu.memory_space<vmem>>, vector<8x512xf32>
    %c0_1 = arith.constant 0 : index
    %c0_2 = arith.constant 0 : index
    %1 = vector.load %arg2[%c0_1, %c0_2] : memref<512x256xf32, #tpu.memory_space<vmem>>, vector<512x256xf32>
    %cst = arith.constant dense<0.000000e+00> : vector<8x256xf32>
    %2 = tpu.matmul %0, %1, %cst {dimension_numbers = #tpu.dot_dimension_numbers<[1], [0], [0], [1], [0, 0, 1, 1], [], []>} : vector<8x512xf32>, vector<512x256xf32>, vector<8x256xf32> -> vector<8x256xf32>
    %c0_3 = arith.constant 0 : index
    %c0_4 = arith.constant 0 : index
    %3 = vector.load %arg3[%c0_3, %c0_4] : memref<1x256xf32, #tpu.memory_space<vmem>>, vector<1x256xf32>
    %4 = vector.broadcast %3 : vector<1x256xf32> to vector<8x256xf32>
    %5 = arith.addf %2, %4 : vector<8x256xf32>
    %cst_5 = arith.constant 0.000000e+00 : f32
    %6 = vector.broadcast %cst_5 : f32 to vector<8x256xf32>
    %7 = arith.maximumf %5, %6 : vector<8x256xf32>
    %c0_6 = arith.constant 0 : index
    %c0_7 = arith.constant 0 : index
    %8 = vector.load %arg4[%c0_6, %c0_7] : memref<256x128xf32, #tpu.memory_space<vmem>>, vector<256x128xf32>
    %cst_8 = arith.constant dense<0.000000e+00> : vector<8x128xf32>
    %9 = tpu.matmul %7, %8, %cst_8 {dimension_numbers = #tpu.dot_dimension_numbers<[1], [0], [0], [1], [0, 0, 1, 1], [], []>} : vector<8x256xf32>, vector<256x128xf32>, vector<8x128xf32> -> vector<8x128xf32>
    %c0_9 = arith.constant 0 : index
    %c0_10 = arith.constant 0 : index
    %10 = vector.load %arg5[%c0_9, %c0_10] : memref<1x128xf32, #tpu.memory_space<vmem>>, vector<1x128xf32>
    %11 = vector.broadcast %10 : vector<1x128xf32> to vector<8x128xf32>
    %12 = arith.addf %9, %11 : vector<8x128xf32>
    %c0_11 = arith.constant 0 : index
    %c0_12 = arith.constant 0 : index
    %13 = vector.load %arg6[%c0_11, %c0_12] : memref<8x128xf32, #tpu.memory_space<vmem>>, vector<8x128xf32>
    tpu.vector_store %arg6[%c0_11, %c0_12], %12 {strides = array<i32>} : memref<8x128xf32, #tpu.memory_space<vmem>>, vector<8x128xf32>,
    return
  }
  func.func @transform_0(%arg0: i32) -> (i32, i32) {
    %c0_i32 = arith.constant 0 : i32
    %c0_i32_0 = arith.constant 0 : i32
    return %arg0, %c0_i32 : i32, i32
  }
  func.func @transform_1(%arg0: i32) -> (i32, i32) {
    %c0_i32 = arith.constant 0 : i32
    %c0_i32_0 = arith.constant 0 : i32
    %c0_i32_1 = arith.constant 0 : i32
    return %c0_i32, %c0_i32_0 : i32, i32
  }
  func.func @transform_2(%arg0: i32) -> (i32, i32) {
    %c0_i32 = arith.constant 0 : i32
    %c0_i32_0 = arith.constant 0 : i32
    %c0_i32_1 = arith.constant 0 : i32
    return %c0_i32, %c0_i32_0 : i32, i32
  }
  func.func @transform_3(%arg0: i32) -> (i32, i32) {
    %c0_i32 = arith.constant 0 : i32
    %c0_i32_0 = arith.constant 0 : i32
    %c0_i32_1 = arith.constant 0 : i32
    return %c0_i32, %c0_i32_0 : i32, i32
  }
  func.func @transform_4(%arg0: i32) -> (i32, i32) {
    %c0_i32 = arith.constant 0 : i32
    %c0_i32_0 = arith.constant 0 : i32
    %c0_i32_1 = arith.constant 0 : i32
    return %c0_i32, %c0_i32_0 : i32, i32
  }
  func.func @transform_5(%arg0: i32) -> (i32, i32) {
    %c0_i32 = arith.constant 0 : i32
    %c0_i32_0 = arith.constant 0 : i32
    return %arg0, %c0_i32 : i32, i32
  }
}

</mosaic_0001>

<llo_original>
// kernel: digit_nn_forward.1
$region0: #{digit_nn_forward.1}
  #allocation0 [shape = 'u32[]', space=smem, size = 0x4, offset = 0x4, fixed_abs, tag = 'smem constant byte address 0x4 - core index']
  #allocation1 [shape = 'u32[144,128]{1,0:T(1,128)}', space=vmem, size = 0x12000, scoped, tag = 'internal scratch']
  %s0 = inlined_call_operand.vmem [shape: f32[8,512], index: 0, kind: input, shape index: {}]
  %s1 = inlined_call_operand.vmem [shape: f32[512,256], index: 1, kind: input, shape index: {}]
  %s2 = inlined_call_operand.vmem [shape: f32[1,256], index: 2, kind: input, shape index: {}]
  %s3 = inlined_call_operand.vmem [shape: f32[256,128], index: 3, kind: input, shape index: {}]
  %s4 = inlined_call_operand.vmem [shape: f32[1,128], index: 4, kind: input, shape index: {}]
  %s5 = inlined_call_operand.vmem [shape: f32[8,128], index: 5, kind: output, shape index: {}]
  %s6 = sld [smem:[#allocation0]]
  $region30: #{digit_nn_forward.1} parent=0
    _
  %s8 = ssub.s32 1, %s6
  %s9 = scalar_select 0, %s8, %s6
  // Predicated region
  $region2: #{digit_nn_forward.1} parent=0 // pred_check
    _
  $region3: #{digit_nn_forward.1} parent=0 // pred_check_branch
    %11 = sbr.rel (0) target = $region5
  $region4: #{digit_nn_forward.1} parent=0 // pred_region
    _
  $region5: #{digit_nn_forward.1} parent=0 // pred_fallthru
    _
  // Predicated region
  $region6: #{digit_nn_forward.1} parent=0 // pred_check
    _
  $region7: #{digit_nn_forward.1} parent=0 // pred_check_branch
    %13 = sbr.rel (0) target = $region9
  $region8: #{digit_nn_forward.1} parent=0 // pred_region
    _
  $region9: #{digit_nn_forward.1} parent=0 // pred_fallthru
    _
  // Predicated region
  $region10: #{digit_nn_forward.1} parent=0 // pred_check
    _
  $region11: #{digit_nn_forward.1} parent=0 // pred_check_branch
    %15 = sbr.rel (0) target = $region13
  $region12: #{digit_nn_forward.1} parent=0 // pred_region
    _
  $region13: #{digit_nn_forward.1} parent=0 // pred_fallthru
    _
  // Predicated region
  $region14: #{digit_nn_forward.1} parent=0 // pred_check
    _
  $region15: #{digit_nn_forward.1} parent=0 // pred_check_branch
    %17 = sbr.rel (0) target = $region17
  $region16: #{digit_nn_forward.1} parent=0 // pred_region
    _
  $region17: #{digit_nn_forward.1} parent=0 // pred_fallthru
    _
  // Predicated region
  $region18: #{digit_nn_forward.1} parent=0 // pred_check
    _
  $region19: #{digit_nn_forward.1} parent=0 // pred_check_branch
    %19 = sbr.rel (0) target = $region21
  $region20: #{digit_nn_forward.1} parent=0 // pred_region
    _
  $region21: #{digit_nn_forward.1} parent=0 // pred_fallthru
    _
  %v20 = vld [vmem:[%s0] sm:$0xff]
  %v21 = vld [vmem:[%s0 + $0x8] sm:$0xff]
  %v22 = vld [vmem:[%s0 + $0x10] sm:$0xff]
  %v23 = vld [vmem:[%s0 + $0x18] sm:$0xff]
  %v24 = vld [vmem:[%s1] sm:$0xff]
  %v25 = vld [vmem:[%s1 + $0x8] sm:$0xff]
  %v26 = vld [vmem:[%s1 + $0x10] sm:$0xff]
  %v27 = vld [vmem:[%s1 + $0x18] sm:$0xff]
  %v28 = vld [vmem:[%s1 + $0x20] sm:$0xff]
  %v29 = vld [vmem:[%s1 + $0x28] sm:$0xff]
  %v30 = vld [vmem:[%s1 + $0x30] sm:$0xff]
  %v31 = vld [vmem:[%s1 + $0x38] sm:$0xff]
  %v32 = vld [vmem:[%s1 + $0x40] sm:$0xff]
  %v33 = vld [vmem:[%s1 + $0x48] sm:$0xff]
  %v34 = vld [vmem:[%s1 + $0x50] sm:$0xff]
  %v35 = vld [vmem:[%s1 + $0x58] sm:$0xff]
  %v36 = vld [vmem:[%s1 + $0x60] sm:$0xff]
  %v37 = vld [vmem:[%s1 + $0x68] sm:$0xff]
  %v38 = vld [vmem:[%s1 + $0x70] sm:$0xff]
  %v39 = vld [vmem:[%s1 + $0x78] sm:$0xff]
  %v40 = vld [vmem:[%s1 + $0x80] sm:$0xff]
  %v41 = vld [vmem:[%s1 + $0x88] sm:$0xff]
  %v42 = vld [vmem:[%s1 + $0x90] sm:$0xff]
  %v43 = vld [vmem:[%s1 + $0x98] sm:$0xff]
  %v44 = vld [vmem:[%s1 + $0xa0] sm:$0xff]
  %v45 = vld [vmem:[%s1 + $0xa8] sm:$0xff]
  %v46 = vld [vmem:[%s1 + $0xb0] sm:$0xff]
  %v47 = vld [vmem:[%s1 + $0xb8] sm:$0xff]
  %v48 = vld [vmem:[%s1 + $0xc0] sm:$0xff]
  %v49 = vld [vmem:[%s1 + $0xc8] sm:$0xff]
  %v50 = vld [vmem:[%s1 + $0xd0] sm:$0xff]
  %v51 = vld [vmem:[%s1 + $0xd8] sm:$0xff]
  %v52 = vld [vmem:[%s1 + $0xe0] sm:$0xff]
  %v53 = vld [vmem:[%s1 + $0xe8] sm:$0xff]
  %v54 = vld [vmem:[%s1 + $0xf0] sm:$0xff]
  %v55 = vld [vmem:[%s1 + $0xf8] sm:$0xff]
  %v56 = vld [vmem:[%s1 + $0x100] sm:$0xff]
  %v57 = vld [vmem:[%s1 + $0x108] sm:$0xff]
  %v58 = vld [vmem:[%s1 + $0x110] sm:$0xff]
  %v59 = vld [vmem:[%s1 + $0x118] sm:$0xff]
  %v60 = vld [vmem:[%s1 + $0x120] sm:$0xff]
  %v61 = vld [vmem:[%s1 + $0x128] sm:$0xff]
  %v62 = vld [vmem:[%s1 + $0x130] sm:$0xff]
  %v63 = vld [vmem:[%s1 + $0x138] sm:$0xff]
  %v64 = vld [vmem:[%s1 + $0x140] sm:$0xff]
  %v65 = vld [vmem:[%s1 + $0x148] sm:$0xff]
  %v66 = vld [vmem:[%s1 + $0x150] sm:$0xff]
  %v67 = vld [vmem:[%s1 + $0x158] sm:$0xff]
  %v68 = vld [vmem:[%s1 + $0x160] sm:$0xff]
  %v69 = vld [vmem:[%s1 + $0x168] sm:$0xff]
  %v70 = vld [vmem:[%s1 + $0x170] sm:$0xff]
  %v71 = vld [vmem:[%s1 + $0x178] sm:$0xff]
  %v72 = vld [vmem:[%s1 + $0x180] sm:$0xff]
  %v73 = vld [vmem:[%s1 + $0x188] sm:$0xff]
  %v74 = vld [vmem:[%s1 + $0x190] sm:$0xff]
  %v75 = vld [vmem:[%s1 + $0x198] sm:$0xff]
  %v76 = vld [vmem:[%s1 + $0x1a0] sm:$0xff]
  %v77 = vld [vmem:[%s1 + $0x1a8] sm:$0xff]
  %v78 = vld [vmem:[%s1 + $0x1b0] sm:$0xff]
  %v79 = vld [vmem:[%s1 + $0x1b8] sm:$0xff]
  %v80 = vld [vmem:[%s1 + $0x1c0] sm:$0xff]
  %v81 = vld [vmem:[%s1 + $0x1c8] sm:$0xff]
  %v82 = vld [vmem:[%s1 + $0x1d0] sm:$0xff]
  %v83 = vld [vmem:[%s1 + $0x1d8] sm:$0xff]
  %v84 = vld [vmem:[%s1 + $0x1e0] sm:$0xff]
  %v85 = vld [vmem:[%s1 + $0x1e8] sm:$0xff]
  %v86 = vld [vmem:[%s1 + $0x1f0] sm:$0xff]
  %v87 = vld [vmem:[%s1 + $0x1f8] sm:$0xff]
  %v88 = vld [vmem:[%s1 + $0x200] sm:$0xff]
  %v89 = vld [vmem:[%s1 + $0x208] sm:$0xff]
  %v90 = vld [vmem:[%s1 + $0x210] sm:$0xff]
  %v91 = vld [vmem:[%s1 + $0x218] sm:$0xff]
  %v92 = vld [vmem:[%s1 + $0x220] sm:$0xff]
  %v93 = vld [vmem:[%s1 + $0x228] sm:$0xff]
  %v94 = vld [vmem:[%s1 + $0x230] sm:$0xff]
  %v95 = vld [vmem:[%s1 + $0x238] sm:$0xff]
  %v96 = vld [vmem:[%s1 + $0x240] sm:$0xff]
  %v97 = vld [vmem:[%s1 + $0x248] sm:$0xff]
  %v98 = vld [vmem:[%s1 + $0x250] sm:$0xff]
  %v99 = vld [vmem:[%s1 + $0x258] sm:$0xff]
  %v100 = vld [vmem:[%s1 + $0x260] sm:$0xff]
  %v101 = vld [vmem:[%s1 + $0x268] sm:$0xff]
  %v102 = vld [vmem:[%s1 + $0x270] sm:$0xff]
  %v103 = vld [vmem:[%s1 + $0x278] sm:$0xff]
  %v104 = vld [vmem:[%s1 + $0x280] sm:$0xff]
  %v105 = vld [vmem:[%s1 + $0x288] sm:$0xff]
  %v106 = vld [vmem:[%s1 + $0x290] sm:$0xff]
  %v107 = vld [vmem:[%s1 + $0x298] sm:$0xff]
  %v108 = vld [vmem:[%s1 + $0x2a0] sm:$0xff]
  %v109 = vld [vmem:[%s1 + $0x2a8] sm:$0xff]
  %v110 = vld [vmem:[%s1 + $0x2b0] sm:$0xff]
  %v111 = vld [vmem:[%s1 + $0x2b8] sm:$0xff]
  %v112 = vld [vmem:[%s1 + $0x2c0] sm:$0xff]
  %v113 = vld [vmem:[%s1 + $0x2c8] sm:$0xff]
  %v114 = vld [vmem:[%s1 + $0x2d0] sm:$0xff]
  %v115 = vld [vmem:[%s1 + $0x2d8] sm:$0xff]
  %v116 = vld [vmem:[%s1 + $0x2e0] sm:$0xff]
  %v117 = vld [vmem:[%s1 + $0x2e8] sm:$0xff]
  %v118 = vld [vmem:[%s1 + $0x2f0] sm:$0xff]
  %v119 = vld [vmem:[%s1 + $0x2f8] sm:$0xff]
  %v120 = vld [vmem:[%s1 + $0x300] sm:$0xff]
  %v121 = vld [vmem:[%s1 + $0x308] sm:$0xff]
  %v122 = vld [vmem:[%s1 + $0x310] sm:$0xff]
  %v123 = vld [vmem:[%s1 + $0x318] sm:$0xff]
  %v124 = vld [vmem:[%s1 + $0x320] sm:$0xff]
  %v125 = vld [vmem:[%s1 + $0x328] sm:$0xff]
  %v126 = vld [vmem:[%s1 + $0x330] sm:$0xff]
  %v127 = vld [vmem:[%s1 + $0x338] sm:$0xff]
  %v128 = vld [vmem:[%s1 + $0x340] sm:$0xff]
  %v129 = vld [vmem:[%s1 + $0x348] sm:$0xff]
  %v130 = vld [vmem:[%s1 + $0x350] sm:$0xff]
  %v131 = vld [vmem:[%s1 + $0x358] sm:$0xff]
  %v132 = vld [vmem:[%s1 + $0x360] sm:$0xff]
  %v133 = vld [vmem:[%s1 + $0x368] sm:$0xff]
  %v134 = vld [vmem:[%s1 + $0x370] sm:$0xff]
  %v135 = vld [vmem:[%s1 + $0x378] sm:$0xff]
  %v136 = vld [vmem:[%s1 + $0x380] sm:$0xff]
  %v137 = vld [vmem:[%s1 + $0x388] sm:$0xff]
  %v138 = vld [vmem:[%s1 + $0x390] sm:$0xff]
  %v139 = vld [vmem:[%s1 + $0x398] sm:$0xff]
  %v140 = vld [vmem:[%s1 + $0x3a0] sm:$0xff]
  %v141 = vld [vmem:[%s1 + $0x3a8] sm:$0xff]
  %v142 = vld [vmem:[%s1 + $0x3b0] sm:$0xff]
  %v143 = vld [vmem:[%s1 + $0x3b8] sm:$0xff]
  %v144 = vld [vmem:[%s1 + $0x3c0] sm:$0xff]
  %v145 = vld [vmem:[%s1 + $0x3c8] sm:$0xff]
  %v146 = vld [vmem:[%s1 + $0x3d0] sm:$0xff]
  %v147 = vld [vmem:[%s1 + $0x3d8] sm:$0xff]
  %v148 = vld [vmem:[%s1 + $0x3e0] sm:$0xff]
  %v149 = vld [vmem:[%s1 + $0x3e8] sm:$0xff]
  %v150 = vld [vmem:[%s1 + $0x3f0] sm:$0xff]
  %v151 = vld [vmem:[%s1 + $0x3f8] sm:$0xff]
  %v152 = vld [vmem:[%s2] sm:$0x3]
  %v154 = vlaneseq
  %v155 = vshrl.u32 %v154, 7
  %v156 = vsub.s32 0, %v155
  %v157 = vrot.slane %v152, %v156
  %v158 = vlaneseq
  %v159 = vshrl.u32 %v158, 7
  %v160 = vsub.s32 1, %v159
  %v161 = vrot.slane %v152, %v160
  %164 = vmatprep.subr.mxu0 %v25
  %165 = vmatpush1.msra.mxu0 %v24
  %166 = vmatprep.subr.mxu0 %v27
  %167 = vmatpush1.msra.mxu0 %v26
  %168 = vmatprep.subr.mxu0 %v29
  %169 = vmatpush1.msra.mxu0 %v28
  %170 = vmatprep.subr.mxu0 %v31
  %171 = vmatpush1.msra.mxu0 %v30
  %172 = vmatprep.subr.mxu0 %v33
  %173 = vmatpush1.msra.mxu0 %v32
  %174 = vmatprep.subr.mxu0 %v35
  %175 = vmatpush1.msra.mxu0 %v34
  %176 = vmatprep.subr.mxu0 %v37
  %177 = vmatpush1.msra.mxu0 %v36
  %178 = vmatprep.subr.mxu0 %v39
  %179 = vmatpush1.msra.mxu0 %v38
  %180 = vmatprep.subr.mxu0 %v41
  %181 = vmatpush1.msra.mxu0 %v40
  %182 = vmatprep.subr.mxu0 %v43
  %183 = vmatpush1.msra.mxu0 %v42
  %184 = vmatprep.subr.mxu0 %v45
  %185 = vmatpush1.msra.mxu0 %v44
  %186 = vmatprep.subr.mxu0 %v47
  %187 = vmatpush1.msra.mxu0 %v46
  %188 = vmatprep.subr.mxu0 %v49
  %189 = vmatpush1.msra.mxu0 %v48
  %190 = vmatprep.subr.mxu0 %v51
  %191 = vmatpush1.msra.mxu0 %v50
  %192 = vmatprep.subr.mxu0 %v53
  %193 = vmatpush1.msra.mxu0 %v52
  %194 = vmatprep.subr.mxu0 %v55
  %195 = vmatpush1.msra.mxu0 %v54
  %196 = vmatprep.subr.mxu0 %v57
  %197 = vmatpush1.msra.mxu0 %v56
  %198 = vmatprep.subr.mxu0 %v59
  %199 = vmatpush1.msra.mxu0 %v58
  %200 = vmatprep.subr.mxu0 %v61
  %201 = vmatpush1.msra.mxu0 %v60
  %202 = vmatprep.subr.mxu0 %v63
  %203 = vmatpush1.msra.mxu0 %v62
  %204 = vmatprep.subr.mxu0 %v65
  %205 = vmatpush1.msra.mxu0 %v64
  %206 = vmatprep.subr.mxu0 %v67
  %207 = vmatpush1.msra.mxu0 %v66
  %208 = vmatprep.subr.mxu0 %v69
  %209 = vmatpush1.msra.mxu0 %v68
  %210 = vmatprep.subr.mxu0 %v71
  %211 = vmatpush1.msra.mxu0 %v70
  %212 = vmatprep.subr.mxu0 %v73
  %213 = vmatpush1.msra.mxu0 %v72
  %214 = vmatprep.subr.mxu0 %v75
  %215 = vmatpush1.msra.mxu0 %v74
  %216 = vmatprep.subr.mxu0 %v77
  %217 = vmatpush1.msra.mxu0 %v76
  %218 = vmatprep.subr.mxu0 %v79
  %219 = vmatpush1.msra.mxu0 %v78
  %220 = vmatprep.subr.mxu0 %v81
  %221 = vmatpush1.msra.mxu0 %v80
  %222 = vmatprep.subr.mxu0 %v83
  %223 = vmatpush1.msra.mxu0 %v82
  %224 = vmatprep.subr.mxu0 %v85
  %225 = vmatpush1.msra.mxu0 %v84
  %226 = vmatprep.subr.mxu0 %v87
  %227 = vmatpush1.msra.mxu0 %v86
  %228 = vmatprep.mubr.f32.mxu0 %v21
  %229 = vmatmul.mubr.f32.gmra.mrb[0].mxu0 %v20
  %v230 = vpop.f32.mrb[0].mxu0
  %v231 = vadd.f32 %v157, %v230
  %v232 = vpop.f32.mrb[0].mxu0
  %v233 = vadd.f32 %v161, %v232
  %234 = vdwg.mxu0
  %235 = vmatprep.subr.mxu0 %v89
  %236 = vmatpush1.msra.mxu0 %v88
  %237 = vmatprep.subr.mxu0 %v91
  %238 = vmatpush1.msra.mxu0 %v90
  %239 = vmatprep.subr.mxu0 %v93
  %240 = vmatpush1.msra.mxu0 %v92
  %241 = vmatprep.subr.mxu0 %v95
  %242 = vmatpush1.msra.mxu0 %v94
  %243 = vmatprep.subr.mxu0 %v97
  %244 = vmatpush1.msra.mxu0 %v96
  %245 = vmatprep.subr.mxu0 %v99
  %246 = vmatpush1.msra.mxu0 %v98
  %247 = vmatprep.subr.mxu0 %v101
  %248 = vmatpush1.msra.mxu0 %v100
  %249 = vmatprep.subr.mxu0 %v103
  %250 = vmatpush1.msra.mxu0 %v102
  %251 = vmatprep.subr.mxu0 %v105
  %252 = vmatpush1.msra.mxu0 %v104
  %253 = vmatprep.subr.mxu0 %v107
  %254 = vmatpush1.msra.mxu0 %v106
  %255 = vmatprep.subr.mxu0 %v109
  %256 = vmatpush1.msra.mxu0 %v108
  %257 = vmatprep.subr.mxu0 %v111
  %258 = vmatpush1.msra.mxu0 %v110
  %259 = vmatprep.subr.mxu0 %v113
  %260 = vmatpush1.msra.mxu0 %v112
  %261 = vmatprep.subr.mxu0 %v115
  %262 = vmatpush1.msra.mxu0 %v114
  %263 = vmatprep.subr.mxu0 %v117
  %264 = vmatpush1.msra.mxu0 %v116
  %265 = vmatprep.subr.mxu0 %v119
  %266 = vmatpush1.msra.mxu0 %v118
  %267 = vmatprep.subr.mxu0 %v121
  %268 = vmatpush1.msra.mxu0 %v120
  %269 = vmatprep.subr.mxu0 %v123
  %270 = vmatpush1.msra.mxu0 %v122
  %271 = vmatprep.subr.mxu0 %v125
  %272 = vmatpush1.msra.mxu0 %v124
  %273 = vmatprep.subr.mxu0 %v127
  %274 = vmatpush1.msra.mxu0 %v126
  %275 = vmatprep.subr.mxu0 %v129
  %276 = vmatpush1.msra.mxu0 %v128
  %277 = vmatprep.subr.mxu0 %v131
  %278 = vmatpush1.msra.mxu0 %v130
  %279 = vmatprep.subr.mxu0 %v133
  %280 = vmatpush1.msra.mxu0 %v132
  %281 = vmatprep.subr.mxu0 %v135
  %282 = vmatpush1.msra.mxu0 %v134
  %283 = vmatprep.subr.mxu0 %v137
  %284 = vmatpush1.msra.mxu0 %v136
  %285 = vmatprep.subr.mxu0 %v139
  %286 = vmatpush1.msra.mxu0 %v138
  %287 = vmatprep.subr.mxu0 %v141
  %288 = vmatpush1.msra.mxu0 %v140
  %289 = vmatprep.subr.mxu0 %v143
  %290 = vmatpush1.msra.mxu0 %v142
  %291 = vmatprep.subr.mxu0 %v145
  %292 = vmatpush1.msra.mxu0 %v144
  %293 = vmatprep.subr.mxu0 %v147
  %294 = vmatpush1.msra.mxu0 %v146
  %295 = vmatprep.subr.mxu0 %v149
  %296 = vmatpush1.msra.mxu0 %v148
  %297 = vmatprep.subr.mxu0 %v151
  %298 = vmatpush1.msra.mxu0 %v150
  %299 = vmatprep.mubr.f32.mxu0 %v23
  %300 = vmatmul.mubr.f32.gmra.mrb[0].mxu0 %v22
  %v301 = vpop.f32.mrb[0].mxu0
  %v302 = vadd.f32 %v231, %v301
  %v303 = vpop.f32.mrb[0].mxu0
  %v304 = vadd.f32 %v233, %v303
  %305 = vdwg.mxu0
  %v306 = vmax.f32 %v302, 0.0
  %v307 = vmax.f32 %v304, 0.0
  %v308 = vld [vmem:[%s3] sm:$0xff]
  %v309 = vld [vmem:[%s3 + $0x8] sm:$0xff]
  %v310 = vld [vmem:[%s3 + $0x10] sm:$0xff]
  %v311 = vld [vmem:[%s3 + $0x18] sm:$0xff]
  %v312 = vld [vmem:[%s3 + $0x20] sm:$0xff]
  %v313 = vld [vmem:[%s3 + $0x28] sm:$0xff]
  %v314 = vld [vmem:[%s3 + $0x30] sm:$0xff]
  %v315 = vld [vmem:[%s3 + $0x38] sm:$0xff]
  %v316 = vld [vmem:[%s3 + $0x40] sm:$0xff]
  %v317 = vld [vmem:[%s3 + $0x48] sm:$0xff]
  %v318 = vld [vmem:[%s3 + $0x50] sm:$0xff]
  %v319 = vld [vmem:[%s3 + $0x58] sm:$0xff]
  %v320 = vld [vmem:[%s3 + $0x60] sm:$0xff]
  %v321 = vld [vmem:[%s3 + $0x68] sm:$0xff]
  %v322 = vld [vmem:[%s3 + $0x70] sm:$0xff]
  %v323 = vld [vmem:[%s3 + $0x78] sm:$0xff]
  %v324 = vld [vmem:[%s3 + $0x80] sm:$0xff]
  %v325 = vld [vmem:[%s3 + $0x88] sm:$0xff]
  %v326 = vld [vmem:[%s3 + $0x90] sm:$0xff]
  %v327 = vld [vmem:[%s3 + $0x98] sm:$0xff]
  %v328 = vld [vmem:[%s3 + $0xa0] sm:$0xff]
  %v329 = vld [vmem:[%s3 + $0xa8] sm:$0xff]
  %v330 = vld [vmem:[%s3 + $0xb0] sm:$0xff]
  %v331 = vld [vmem:[%s3 + $0xb8] sm:$0xff]
  %v332 = vld [vmem:[%s3 + $0xc0] sm:$0xff]
  %v333 = vld [vmem:[%s3 + $0xc8] sm:$0xff]
  %v334 = vld [vmem:[%s3 + $0xd0] sm:$0xff]
  %v335 = vld [vmem:[%s3 + $0xd8] sm:$0xff]
  %v336 = vld [vmem:[%s3 + $0xe0] sm:$0xff]
  %v337 = vld [vmem:[%s3 + $0xe8] sm:$0xff]
  %v338 = vld [vmem:[%s3 + $0xf0] sm:$0xff]
  %v339 = vld [vmem:[%s3 + $0xf8] sm:$0xff]
  %v340 = vld [vmem:[%s4] sm:$0x1]
  %v342 = vlaneseq
  %v343 = vshrl.u32 %v342, 7
  %v344 = vsub.s32 0, %v343
  %v345 = vrot.slane %v340, %v344
  %347 = vmatprep.subr.mxu0 0.0
  %348 = vmatpush1.msra.mxu0 %v308
  %349 = vmatprep.subr.mxu0 0.0
  %350 = vmatpush1.msra.mxu0 %v309
  %351 = vmatprep.subr.mxu0 0.0
  %352 = vmatpush1.msra.mxu0 %v310
  %353 = vmatprep.subr.mxu0 0.0
  %354 = vmatpush1.msra.mxu0 %v311
  %355 = vmatprep.subr.mxu0 0.0
  %356 = vmatpush1.msra.mxu0 %v312
  %357 = vmatprep.subr.mxu0 0.0
  %358 = vmatpush1.msra.mxu0 %v313
  %359 = vmatprep.subr.mxu0 0.0
  %360 = vmatpush1.msra.mxu0 %v314
  %361 = vmatprep.subr.mxu0 0.0
  %362 = vmatpush1.msra.mxu0 %v315
  %363 = vmatprep.subr.mxu0 0.0
  %364 = vmatpush1.msra.mxu0 %v316
  %365 = vmatprep.subr.mxu0 0.0
  %366 = vmatpush1.msra.mxu0 %v317
  %367 = vmatprep.subr.mxu0 0.0
  %368 = vmatpush1.msra.mxu0 %v318
  %369 = vmatprep.subr.mxu0 0.0
  %370 = vmatpush1.msra.mxu0 %v319
  %371 = vmatprep.subr.mxu0 0.0
  %372 = vmatpush1.msra.mxu0 %v320
  %373 = vmatprep.subr.mxu0 0.0
  %374 = vmatpush1.msra.mxu0 %v321
  %375 = vmatprep.subr.mxu0 0.0
  %376 = vmatpush1.msra.mxu0 %v322
  %377 = vmatprep.subr.mxu0 0.0
  %378 = vmatpush1.msra.mxu0 %v323
  %379 = vmatprep.subr.mxu0 0.0
  %380 = vmatpush1.msra.mxu0 %v324
  %381 = vmatprep.subr.mxu0 0.0
  %382 = vmatpush1.msra.mxu0 %v325
  %383 = vmatprep.subr.mxu0 0.0
  %384 = vmatpush1.msra.mxu0 %v326
  %385 = vmatprep.subr.mxu0 0.0
  %386 = vmatpush1.msra.mxu0 %v327
  %387 = vmatprep.subr.mxu0 0.0
  %388 = vmatpush1.msra.mxu0 %v328
  %389 = vmatprep.subr.mxu0 0.0
  %390 = vmatpush1.msra.mxu0 %v329
  %391 = vmatprep.subr.mxu0 0.0
  %392 = vmatpush1.msra.mxu0 %v330
  %393 = vmatprep.subr.mxu0 0.0
  %394 = vmatpush1.msra.mxu0 %v331
  %395 = vmatprep.subr.mxu0 0.0
  %396 = vmatpush1.msra.mxu0 %v332
  %397 = vmatprep.subr.mxu0 0.0
  %398 = vmatpush1.msra.mxu0 %v333
  %399 = vmatprep.subr.mxu0 0.0
  %400 = vmatpush1.msra.mxu0 %v334
  %401 = vmatprep.subr.mxu0 0.0
  %402 = vmatpush1.msra.mxu0 %v335
  %403 = vmatprep.subr.mxu0 0.0
  %404 = vmatpush1.msra.mxu0 %v336
  %405 = vmatprep.subr.mxu0 0.0
  %406 = vmatpush1.msra.mxu0 %v337
  %407 = vmatprep.subr.mxu0 0.0
  %408 = vmatpush1.msra.mxu0 %v338
  %409 = vmatprep.subr.mxu0 0.0
  %410 = vmatpush1.msra.mxu0 %v339
  %411 = vmatprep.mubr.f32.mxu0 %v307
  %412 = vmatmul.mubr.f32.gmra.mrb[0].mxu0 %v306
  %v413 = vpop.f32.mrb[0].mxu0
  %v414 = vadd.f32 %v345, %v413
  %v415 = vpop.f32.mrb[0].mxu0
  %416 = vdwg.mxu0
  %417 = vst [vmem:[%s5] sm:$0xff] %v414
  // Predicated region
  $region22: #{digit_nn_forward.1} parent=0 // pred_check
    _
  $region23: #{digit_nn_forward.1} parent=0 // pred_check_branch
    %419 = sbr.rel (0) target = $region25
  $region24: #{digit_nn_forward.1} parent=0 // pred_region
    _
  $region25: #{digit_nn_forward.1} parent=0 // pred_fallthru
    _
  // Predicated region
  $region26: #{digit_nn_forward.1} parent=0 // pred_check
    _
  $region27: #{digit_nn_forward.1} parent=0 // pred_check_branch
    %421 = sbr.rel (0) target = $region29
  $region28: #{digit_nn_forward.1} parent=0 // pred_region
    _
  $region29: #{digit_nn_forward.1} parent=0 // pred_fallthru
    _

</llo_original>
